<compile_context>
chip_gen: v6e
topology: v6e:2x2x1
jax: 0.10.0
libtpu: 0.0.40
codegen_flags: <defaults>
</compile_context>

<pallas_src>
import jax
import jax.numpy as jnp
from jax.experimental import pallas as pl
from jax.experimental.pallas import tpu as pltpu


def _dma_copy_kernel(src_ref, dst_ref, sem):
    # Single whole-array HBM->HBM DMA.  No VMEM staging, no vld/vst through
    # vregs — for a bit-exact identity copy the DMA engine alone is optimal.
    copy = pltpu.make_async_copy(src_ref, dst_ref, sem)
    copy.start()
    copy.wait()


@jax.jit
def noise_forward(noise: jax.Array) -> jax.Array:
    """Materialize a fresh buffer equal to the noise parameter via Pallas.

    The true hot path of Noise.forward is to return the parameter directly
    (see NoisePallas.__call__); this kernel exists only when a distinct
    output buffer is explicitly required.  It performs one whole-array
    HBM->HBM DMA: exactly 2 * size bytes of HBM traffic, no grid steps,
    no VMEM usage, no wrapper-side pad/slice.
    """
    if noise.size == 0:
        # Nothing to copy; avoid launching a kernel on an empty array.
        return noise

    itemsize = jnp.dtype(noise.dtype).itemsize
    return pl.pallas_call(
        _dma_copy_kernel,
        out_shape=jax.ShapeDtypeStruct(noise.shape, noise.dtype),
        in_specs=[pl.BlockSpec(memory_space=pl.ANY)],
        out_specs=pl.BlockSpec(memory_space=pl.ANY),
        scratch_shapes=[pltpu.SemaphoreType.DMA],
        cost_estimate=pl.CostEstimate(
            flops=0,
            transcendentals=0,
            bytes_accessed=2 * noise.size * itemsize,
        ),
    )(noise)


class NoisePallas:
    """Mirror of the PyTorch module: holds the parameter, forward returns it.

    __call__ returns the stored parameter object itself (identity forward,
    exactly like `return self.noise` in PyTorch).  Use .materialize() when a
    distinct device buffer is required; it runs the Pallas DMA-copy kernel.
    """

    def __init__(self, key, batch_size, *dim, dtype=jnp.float32):
        # Deterministic stand-in for torch.randn(batch_size, *dim).
        self.noise = jax.random.normal(key, (batch_size, *dim), dtype=dtype)

    def __call__(self):
        # Hot path: forward is an identity — no HBM traffic, no kernel.
        return self.noise

    def materialize(self):
        # Explicit-copy path (distinct buffer handle) via the Pallas kernel.
        return noise_forward(self.noise)


if __name__ == "__main__":
    key = jax.random.PRNGKey(0)
    batch_size, C, H, W = 2, 4, 16, 16  # small shapes consistent with the module
    module = NoisePallas(key, batch_size, C, H, W)

    # Hot path (identity, matches PyTorch "return self.noise" semantics).
    fast = module()
    assert fast is module.noise

    # Pallas DMA-copy path (run the kernel once).
    out = module.materialize()
    out = jax.block_until_ready(out)

    # Correctness: the kernel output must equal the stored parameter exactly.
    assert out.shape == (batch_size, C, H, W)
    assert out.dtype == module.noise.dtype
    assert bool(jnp.array_equal(out, module.noise))

    print("KERNEL_OK")
</pallas_src>

<mosaic_0001>
module attributes {stable_mosaic.version = 11 : i64} {
  func.func @_dma_copy_kernel(%arg0: memref<2x4x16x16xf32, #tpu.memory_space<any>>, %arg1: memref<2x4x16x16xf32, #tpu.memory_space<any>>, %arg2: memref<!tpu.dma_semaphore, #tpu.memory_space<semaphore_mem>>) attributes {dimension_semantics = [], scalar_prefetch = 0 : i64, scratch_operands = 1 : i64, tpu.core_type = #tpu.core_type<tc>} {
    tpu.enqueue_dma source(%arg0 : memref<2x4x16x16xf32, #tpu.memory_space<any>>) target(%arg1 : memref<2x4x16x16xf32, #tpu.memory_space<any>>) target_semaphore(%arg2 : memref<!tpu.dma_semaphore, #tpu.memory_space<semaphore_mem>>)
    tpu.wait_dma2 semaphore(%arg2 : memref<!tpu.dma_semaphore, #tpu.memory_space<semaphore_mem>>) src(%arg0 : memref<2x4x16x16xf32, #tpu.memory_space<any>>) dst(%arg1 : memref<2x4x16x16xf32, #tpu.memory_space<any>>)
    return
  }
}

</mosaic_0001>

<llo_original>
// kernel: noise_forward.1
$region0: #{noise_forward.1}
  #allocation0 [shape = 'u32[]', space=smem, size = 0x4, offset = 0x4, fixed_abs, tag = 'smem constant byte address 0x4 - core index']
  #allocation1 [shape = 'u32[144,128]{1,0:T(1,128)}', space=vmem, size = 0x12000, scoped, tag = 'internal scratch']
  #allocation2 [shape = 's32[1]{0}', space=sflag, size = 0x4, scoped, tag = 'scratch operand']
  #allocation3 [shape = 's32[]', space=sflag, size = 0x4, offset = 0, fixed_abs, tag = 'sflag constant byte address 0x0 - dummy sync flag']
  #allocation4 [shape = 'u32[0]{0}', space=smem, size = 0, offset = 0, fixed_abs, tag = 'smem constant byte address 0x0 - null']
  %s0 = inlined_call_operand.hbm [shape: f32[2,4,16,16], index: 0, kind: input, shape index: {}]
  %s1 = inlined_call_operand.hbm [shape: f32[2,4,16,16], index: 1, kind: output, shape index: {}]
  %s2 = sld [smem:[#allocation0]]
  $region2: #{noise_forward.1} parent=0
    _
  %s4 = ssub.s32 1, %s2
  %s5 = scalar_select 0, %s4, %s2
  %s7 = sshll.u32 1, 14
  %s8 = sxor.u32 4294967295, %s7
  %12 = dma.general %s0, 2048, %s1, [#allocation2], 131072, [#allocation4], 0, 0
  %s13 = smul.u32 2, 4
  %s14 = smul.u32 %s13, 16
  %s15 = smul.u32 %s14, 1
  %s16 = sshll.u32 %s15, 4
  %17 = dma.done [#allocation2], %s16
  %18 = vsyncmov [#allocation2]
  %s19 = vpop.sfrf %18
  %p20 = scmp.eq.s32.totalorder %s19, 0
  %p21 = pneg %p20
  %23 = shalt.err (%p21)

</llo_original>
